<compile_context>
chip_gen: v7x
topology: tpu7x:2x2x1
jax: 0.10.0
libtpu: 0.0.40
codegen_flags: <defaults>
</compile_context>

<pallas_src>
import math

import jax
import jax.numpy as jnp
from jax.experimental import pallas as pl
from jax.experimental.pallas import tpu as pltpu

_LANE = 512  # small multiple of 128: keeps accumulators / vreg pressure tiny


def _make_pinball_kernel(quantile, tile_rows, lane):
    half_minus_q = float(0.5 - quantile)  # compile-time immediate
    groups = tile_rows // 8               # tile_rows is a multiple of 8

    def kernel(yp_ref, yt_ref, out_ref, acc_abs, acc_e):
        b = pl.program_id(1)

        @pl.when(b == 0)
        def _():
            acc_abs[...] = jnp.zeros_like(acc_abs)
            acc_e[...] = jnp.zeros_like(acc_e)

        e = yp_ref[...].astype(jnp.float32) - yt_ref[...].astype(jnp.float32)
        # Split the sublane axis at the native (8,128) tile boundary (layout
        # no-op); partial sums are pure-VPU vreg adds, no per-step XLU reduce
        # and no per-step SMEM scalar read-modify-write.
        e3 = e.reshape(groups, 8, lane)
        acc_e[...] += e3.sum(axis=0)
        acc_abs[...] += jnp.abs(e3).sum(axis=0)

        @pl.when(b == pl.num_programs(1) - 1)
        def _():
            # Single XLU reduce + SMEM scalar store, once per parallel index.
            s_abs = jnp.sum(acc_abs[...])
            s_e = jnp.sum(acc_e[...])
            out_ref[0, 0] = 0.5 * s_abs + half_minus_q * s_e

    return kernel


def pinball_loss(y_preds, y_true, quantile, *, reduction="mean",
                 target_block_elems=1 << 20):
    """Pinball loss matching PyTorch PinballLoss (reduction 'mean' or 'sum')."""
    assert y_preds.shape == y_true.shape
    assert reduction in ("mean", "sum")

    shape = y_preds.shape
    n_rows = int(math.prod(shape[:-1])) if len(shape) > 1 else 1
    total = int(math.prod(shape)) if shape else 1

    # --- flatten + pad to an (8,128)-aligned, lane-dense (rows, _LANE) slab --
    rows = -(-total // _LANE)                 # ceil
    rows8 = -(-rows // 8) * 8                 # multiple of 8
    target_rows = max(8, (int(target_block_elems) // _LANE) // 8 * 8)
    tile_rows = min(target_rows, rows8)

    n_blocks = -(-rows8 // tile_rows)
    num_parallel = 2 if n_blocks >= 2 else 1  # v7x: 2 TensorCores
    inner_blocks = -(-n_blocks // num_parallel)
    padded_rows = inner_blocks * num_parallel * tile_rows
    padded_total = padded_rows * _LANE

    yp = y_preds.reshape(-1)
    yt = y_true.reshape(-1)
    pad = padded_total - total
    if pad:
        yp = jnp.pad(yp, (0, pad))            # zero rows contribute 0 loss
        yt = jnp.pad(yt, (0, pad))
    yp2 = yp.reshape(padded_rows, _LANE)
    yt2 = yt.reshape(padded_rows, _LANE)

    # --- scoped-VMEM estimate: 2 inputs x 2 pipeline buffers x block,
    #     f32 intermediates for the (possibly bf16) block, 2 small accumulators.
    itemsize = jnp.dtype(yp2.dtype).itemsize
    block_in_bytes = tile_rows * _LANE * itemsize
    block_f32_bytes = tile_rows * _LANE * 4
    vmem_est = 2 * 2 * block_in_bytes + 2 * block_f32_bytes \
        + 2 * 8 * _LANE * 4 + (1 << 20)
    vmem_limit = int(min(max(vmem_est, 32 * 1024 * 1024), 48 * 1024 * 1024))

    kernel = _make_pinball_kernel(float(quantile), tile_rows, _LANE)

    in_spec = pl.BlockSpec((tile_rows, _LANE),
                           lambda p, b: (p * inner_blocks + b, 0))
    partials = pl.pallas_call(
        kernel,
        out_shape=jax.ShapeDtypeStruct((num_parallel, 1), jnp.float32),
        grid=(num_parallel, inner_blocks),
        in_specs=[in_spec, in_spec],
        out_specs=pl.BlockSpec((1, 1), lambda p, b: (p, 0),
                               memory_space=pltpu.MemorySpace.SMEM),
        scratch_shapes=[pltpu.VMEM((8, _LANE), jnp.float32),
                        pltpu.VMEM((8, _LANE), jnp.float32)],
        compiler_params=pltpu.CompilerParams(
            dimension_semantics=("parallel", "arbitrary"),
            vmem_limit_bytes=vmem_limit,
        ),
    )(yp2, yt2)

    total_loss = jnp.sum(partials)
    if reduction == "mean":
        return total_loss / jnp.float32(n_rows)
    return total_loss


def pinball_loss_ref(y_preds, y_true, quantile, reduction="mean"):
    e = y_preds.astype(jnp.float32) - y_true.astype(jnp.float32)
    losses = jnp.maximum((1.0 - quantile) * e, -quantile * e)
    per_row = jnp.sum(losses, axis=-1)
    return jnp.mean(per_row) if reduction == "mean" else jnp.sum(per_row)


if __name__ == "__main__":
    key = jax.random.PRNGKey(0)
    quantile = 0.3

    cases = [
        # (shape, dtype, reduction, kwargs)
        ((16, 128), jnp.float32, "mean", {}),                               # tiny -> single block
        ((2, 8, 128), jnp.float32, "mean", {}),                             # higher-rank (flattened)
        ((32, 256), jnp.float32, "mean", dict(target_block_elems=4096)),    # multi-block + 2-way parallel
        ((3, 5, 7), jnp.float32, "sum", {}),                                # awkward dims -> wrapper pad
        ((64, 384), jnp.bfloat16, "mean", {}),                              # bf16 streaming path
    ]

    for shape, dt, red, kwargs in cases:
        key, k1, k2 = jax.random.split(key, 3)
        yp = jax.random.normal(k1, shape, dtype=jnp.float32).astype(dt)
        yt = jax.random.normal(k2, shape, dtype=jnp.float32).astype(dt)

        out = jax.block_until_ready(
            pinball_loss(yp, yt, quantile, reduction=red, **kwargs))
        expect = pinball_loss_ref(yp, yt, quantile, reduction=red)
        assert jnp.allclose(out, expect, rtol=2e-5, atol=2e-5), (
            shape, dt, red, kwargs, out, expect)

    print("KERNEL_OK")
</pallas_src>

<mosaic_0001>
module attributes {stable_mosaic.version = 11 : i64} {
  func.func @kernel(%arg0: i32, %arg1: i32, %arg2: memref<8x512xf32, #tpu.memory_space<vmem>>, %arg3: memref<8x512xf32, #tpu.memory_space<vmem>>, %arg4: memref<1x1xf32, #tpu.memory_space<smem>>, %arg5: memref<8x512xf32, #tpu.memory_space<vmem>>, %arg6: memref<8x512xf32, #tpu.memory_space<vmem>>) attributes {dimension_semantics = [#tpu.dimension_semantics<parallel>, #tpu.dimension_semantics<arbitrary>], iteration_bounds = array<i64: 1, 1>, scalar_prefetch = 0 : i64, scratch_operands = 2 : i64, tpu.core_type = #tpu.core_type<tc>, window_params = [{transform_indices = @transform_0, window_bounds = array<i64: 8, 512>}, {transform_indices = @transform_1, window_bounds = array<i64: 8, 512>}, {transform_indices = @transform_2, window_bounds = array<i64: 1, 1>}]} {
    %c0_i32 = arith.constant 0 : i32
    %0 = arith.cmpi eq, %arg1, %c0_i32 : i32
    %1 = arith.extui %0 : i1 to i32
    %c0_i32_0 = arith.constant 0 : i32
    %2 = arith.cmpi ne, %1, %c0_i32_0 : i32
    scf.if %2 {
      %cst_15 = arith.constant 0.000000e+00 : f32
      %19 = vector.broadcast %cst_15 : f32 to vector<8x512xf32>
      %c0_16 = arith.constant 0 : index
      %c0_17 = arith.constant 0 : index
      %20 = vector.load %arg5[%c0_16, %c0_17] : memref<8x512xf32, #tpu.memory_space<vmem>>, vector<8x512xf32>
      tpu.vector_store %arg5[%c0_16, %c0_17], %19 {strides = array<i32>} : memref<8x512xf32, #tpu.memory_space<vmem>>, vector<8x512xf32>,
      %cst_18 = arith.constant 0.000000e+00 : f32
      %21 = vector.broadcast %cst_18 : f32 to vector<8x512xf32>
      %c0_19 = arith.constant 0 : index
      %c0_20 = arith.constant 0 : index
      %22 = vector.load %arg6[%c0_19, %c0_20] : memref<8x512xf32, #tpu.memory_space<vmem>>, vector<8x512xf32>
      tpu.vector_store %arg6[%c0_19, %c0_20], %21 {strides = array<i32>} : memref<8x512xf32, #tpu.memory_space<vmem>>, vector<8x512xf32>,
    } else {
    }
    %c0 = arith.constant 0 : index
    %c0_1 = arith.constant 0 : index
    %3 = vector.load %arg2[%c0, %c0_1] : memref<8x512xf32, #tpu.memory_space<vmem>>, vector<8x512xf32>
    %c0_2 = arith.constant 0 : index
    %c0_3 = arith.constant 0 : index
    %4 = vector.load %arg3[%c0_2, %c0_3] : memref<8x512xf32, #tpu.memory_space<vmem>>, vector<8x512xf32>
    %5 = arith.subf %3, %4 : vector<8x512xf32>
    %6 = vector.shape_cast %5 : vector<8x512xf32> to vector<1x8x512xf32>
    %c0_4 = arith.constant 0 : index
    %c0_5 = arith.constant 0 : index
    %7 = vector.load %arg6[%c0_4, %c0_5] : memref<8x512xf32, #tpu.memory_space<vmem>>, vector<8x512xf32>
    %cst = arith.constant dense<0.000000e+00> : vector<8x512xf32>
    %8 = vector.multi_reduction <add>, %6, %cst [0] : vector<1x8x512xf32> to vector<8x512xf32>
    %9 = arith.addf %7, %8 : vector<8x512xf32>
    %c0_6 = arith.constant 0 : index
    %c0_7 = arith.constant 0 : index
    %10 = vector.load %arg6[%c0_6, %c0_7] : memref<8x512xf32, #tpu.memory_space<vmem>>, vector<8x512xf32>
    tpu.vector_store %arg6[%c0_6, %c0_7], %9 {strides = array<i32>} : memref<8x512xf32, #tpu.memory_space<vmem>>, vector<8x512xf32>,
    %c0_8 = arith.constant 0 : index
    %c0_9 = arith.constant 0 : index
    %11 = vector.load %arg5[%c0_8, %c0_9] : memref<8x512xf32, #tpu.memory_space<vmem>>, vector<8x512xf32>
    %12 = math.absf %6 : vector<1x8x512xf32>
    %cst_10 = arith.constant dense<0.000000e+00> : vector<8x512xf32>
    %13 = vector.multi_reduction <add>, %12, %cst_10 [0] : vector<1x8x512xf32> to vector<8x512xf32>
    %14 = arith.addf %11, %13 : vector<8x512xf32>
    %c0_11 = arith.constant 0 : index
    %c0_12 = arith.constant 0 : index
    %15 = vector.load %arg5[%c0_11, %c0_12] : memref<8x512xf32, #tpu.memory_space<vmem>>, vector<8x512xf32>
    tpu.vector_store %arg5[%c0_11, %c0_12], %14 {strides = array<i32>} : memref<8x512xf32, #tpu.memory_space<vmem>>, vector<8x512xf32>,
    %c0_i32_13 = arith.constant 0 : i32
    %16 = arith.cmpi eq, %arg1, %c0_i32_13 : i32
    %17 = arith.extui %16 : i1 to i32
    %c0_i32_14 = arith.constant 0 : i32
    %18 = arith.cmpi ne, %17, %c0_i32_14 : i32
    scf.if %18 {
      %c0_15 = arith.constant 0 : index
      %c0_16 = arith.constant 0 : index
      %19 = vector.load %arg5[%c0_15, %c0_16] : memref<8x512xf32, #tpu.memory_space<vmem>>, vector<8x512xf32>
      %20 = vector.shape_cast %19 : vector<8x512xf32> to vector<1x8x512xf32>
      %cst_17 = arith.constant dense<0.000000e+00> : vector<1xf32>
      %21 = vector.multi_reduction <add>, %20, %cst_17 [1, 2] : vector<1x8x512xf32> to vector<1xf32>
      %22 = vector.shape_cast %21 : vector<1xf32> to vector<1x1x1xf32>
      %23 = vector.extract %22[0, 0, 0] : f32 from vector<1x1x1xf32>
      %c0_18 = arith.constant 0 : index
      %c0_19 = arith.constant 0 : index
      %24 = vector.load %arg6[%c0_18, %c0_19] : memref<8x512xf32, #tpu.memory_space<vmem>>, vector<8x512xf32>
      %25 = vector.shape_cast %24 : vector<8x512xf32> to vector<1x8x512xf32>
      %cst_20 = arith.constant dense<0.000000e+00> : vector<1xf32>
      %26 = vector.multi_reduction <add>, %25, %cst_20 [1, 2] : vector<1x8x512xf32> to vector<1xf32>
      %27 = vector.shape_cast %26 : vector<1xf32> to vector<1x1x1xf32>
      %28 = vector.extract %27[0, 0, 0] : f32 from vector<1x1x1xf32>
      %cst_21 = arith.constant 5.000000e-01 : f32
      %29 = arith.mulf %cst_21, %23 : f32
      %cst_22 = arith.constant 2.000000e-01 : f32
      %30 = arith.mulf %cst_22, %28 : f32
      %31 = arith.addf %29, %30 : f32
      %c0_23 = arith.constant 0 : index
      %c0_24 = arith.constant 0 : index
      %32 = memref.load %arg4[%c0_23, %c0_24] : memref<1x1xf32, #tpu.memory_space<smem>>
      memref.store %31, %arg4[%c0_23, %c0_24] : memref<1x1xf32, #tpu.memory_space<smem>>
    } else {
    }
    return
  }
  func.func @transform_0(%arg0: i32, %arg1: i32) -> (i32, i32) {
    %c1_i32 = arith.constant 1 : i32
    %0 = arith.muli %arg0, %c1_i32 : i32
    %1 = arith.addi %0, %arg1 : i32
    %c0_i32 = arith.constant 0 : i32
    %c0_i32_0 = arith.constant 0 : i32
    return %1, %c0_i32 : i32, i32
  }
  func.func @transform_1(%arg0: i32, %arg1: i32) -> (i32, i32) {
    %c1_i32 = arith.constant 1 : i32
    %0 = arith.muli %arg0, %c1_i32 : i32
    %1 = arith.addi %0, %arg1 : i32
    %c0_i32 = arith.constant 0 : i32
    %c0_i32_0 = arith.constant 0 : i32
    return %1, %c0_i32 : i32, i32
  }
  func.func @transform_2(%arg0: i32, %arg1: i32) -> (i32, i32) {
    %c0_i32 = arith.constant 0 : i32
    %c0_i32_0 = arith.constant 0 : i32
    return %arg0, %c0_i32 : i32, i32
  }
}

</mosaic_0001>

<llo_original>
// kernel: tpu_custom_call.1
$region0: #{tpu_custom_call.1}
  #allocation0 [shape = 'u32[]', space=smem, size = 0x4, offset = 0x4, fixed_abs, tag = 'smem constant byte address 0x4 - core index']
  #allocation1 [shape = 'u32[144,128]{1,0:T(1,128)}', space=vmem, size = 0x12000, scoped, tag = 'internal scratch']
  #allocation2 [shape = 'f32[8,512]{1,0:T(8,128)}', space=vmem, size = 0x4000, scoped, tag = 'scratch operand']
  #allocation3 [shape = 'f32[8,512]{1,0:T(8,128)}', space=vmem, size = 0x4000, scoped, tag = 'scratch operand']
  %s0 = inlined_call_operand.hbm [shape: f32[8,512], index: 0, kind: input, shape index: {}]
  %s1 = inlined_call_operand.hbm [shape: f32[8,512], index: 1, kind: input, shape index: {}]
  %s2 = inlined_call_operand.hbm [shape: f32[1,1], index: 2, kind: output, shape index: {}]
  %s3 = sld [smem:[#allocation0]]
  $region34: #{tpu_custom_call.1} parent=0
    _
  %s5 = ssub.s32 1, %s3
  %s6 = scalar_select 0, %s5, %s3
  $region1: #{tpu_custom_call.1} parent=0
    #allocation4 [shape = 'u8[16384]{0}', space=vmem, size = 0x4000, scoped, tag = 'input window, operand 0, single buffered']
    #allocation5 [shape = 's32[1]{0}', space=sflag, size = 0x4, scoped, tag = 'scoped memory for tpu_custom_call.1']
    #allocation6 [shape = 's32[1]{0}', space=sflag, size = 0x4, scoped, tag = 'scoped memory for tpu_custom_call.1']
    #allocation7 [shape = 'u8[16384]{0}', space=vmem, size = 0x4000, scoped, tag = 'input window, operand 1, single buffered']
    #allocation8 [shape = 's32[1]{0}', space=sflag, size = 0x4, scoped, tag = 'scoped memory for tpu_custom_call.1']
    #allocation9 [shape = 'u8[512]{0}', space=smem, size = 0x200, scoped, tag = 'output window, operand 0, single buffered']
    %7 = vsyncpa [#allocation5], 0
    %8 = vsyncpa [#allocation8], 0
    %9 = vsyncpa [#allocation6], 0
    // Predicated region
    $region2: #{tpu_custom_call.1} parent=1 // pred_check
      _
    $region3: #{tpu_custom_call.1} parent=1 // pred_check_branch
      %11 = sbr.rel (0) target = $region5
    $region4: #{tpu_custom_call.1} parent=1 // pred_region
      %s12 = sadd.s32 0, 0
      %s14 = ssub.s32 512, 512
      %15 = vsyncadd [#allocation5], %s14
      %s16 = smul.addr %s12, 4
      %s17 = smul.addr %s16, 128
      %s18 = scalar_lea.hbm %s0, %s17
      %s20 = sshll.u32 [#allocation4], 4
      %s21 = int_to_ptr.vmem [resolvable:$true] %s20
      %23 = dma.hbm_to_vmem [thread:$0]  %s18, 512, %s21, [#allocation5]
    $region5: #{tpu_custom_call.1} parent=1 // pred_fallthru
      _
    // Predicated region
    $region6: #{tpu_custom_call.1} parent=1 // pred_check
      _
    $region7: #{tpu_custom_call.1} parent=1 // pred_check_branch
      %25 = sbr.rel (0) target = $region9
    $region8: #{tpu_custom_call.1} parent=1 // pred_region
      %s26 = sadd.s32 0, 0
      %s28 = ssub.s32 512, 512
      %29 = vsyncadd [#allocation8], %s28
      %s30 = smul.addr %s26, 4
      %s31 = smul.addr %s30, 128
      %s32 = scalar_lea.hbm %s1, %s31
      %s34 = sshll.u32 [#allocation7], 4
      %s35 = int_to_ptr.vmem [resolvable:$true] %s34
      %37 = dma.hbm_to_vmem [thread:$0]  %s32, 512, %s35, [#allocation8]
    $region9: #{tpu_custom_call.1} parent=1 // pred_fallthru
      _
    // Predicated region
    $region10: #{tpu_custom_call.1} parent=1 // pred_check
      _
    $region11: #{tpu_custom_call.1} parent=1 // pred_check_branch
      %39 = sbr.rel (0) target = $region13
    $region12: #{tpu_custom_call.1} parent=1 // pred_region
      %40 = dma.done [#allocation5], 512
    $region13: #{tpu_custom_call.1} parent=1 // pred_fallthru
      _
    // Predicated region
    $region14: #{tpu_custom_call.1} parent=1 // pred_check
      _
    $region15: #{tpu_custom_call.1} parent=1 // pred_check_branch
      %42 = sbr.rel (0) target = $region17
    $region16: #{tpu_custom_call.1} parent=1 // pred_region
      %43 = dma.done [#allocation8], 512
    $region17: #{tpu_custom_call.1} parent=1 // pred_fallthru
      _
    %s44 = sadd.s32 0, 0
    %s45 = sadd.s32 0, 0
    %p46 = scmp.eq.s32.totalorder 0, 0
    // Predicated region
    $region18: #{tpu_custom_call.1} parent=1 // pred_check
      %p47 = pneg %p46
    $region19: #{tpu_custom_call.1} parent=1 // pred_check_branch
      %49 = sbr.rel (%p47) target = $region21
    $region20: #{tpu_custom_call.1} parent=1 // pred_region
      %50 = vst [vmem:[#allocation2] sm:$0xff] 0.0
      %51 = vst [vmem:[#allocation2 + $0x8] sm:$0xff] 0.0
      %52 = vst [vmem:[#allocation2 + $0x10] sm:$0xff] 0.0
      %53 = vst [vmem:[#allocation2 + $0x18] sm:$0xff] 0.0
      %54 = vst [vmem:[#allocation3] sm:$0xff] 0.0
      %55 = vst [vmem:[#allocation3 + $0x8] sm:$0xff] 0.0
      %56 = vst [vmem:[#allocation3 + $0x10] sm:$0xff] 0.0
      %57 = vst [vmem:[#allocation3 + $0x18] sm:$0xff] 0.0
    $region21: #{tpu_custom_call.1} parent=1 // pred_fallthru
      _
    %v58 = vld [vmem:[#allocation4] sm:$0xff]
    %v59 = vld [vmem:[#allocation4 + $0x8] sm:$0xff]
    %v60 = vld [vmem:[#allocation4 + $0x10] sm:$0xff]
    %v61 = vld [vmem:[#allocation4 + $0x18] sm:$0xff]
    %v62 = vld [vmem:[#allocation7] sm:$0xff]
    %v63 = vld [vmem:[#allocation7 + $0x8] sm:$0xff]
    %v64 = vld [vmem:[#allocation7 + $0x10] sm:$0xff]
    %v65 = vld [vmem:[#allocation7 + $0x18] sm:$0xff]
    %v66 = vsub.f32 %v58, %v62
    %v67 = vsub.f32 %v59, %v63
    %v68 = vsub.f32 %v60, %v64
    %v69 = vsub.f32 %v61, %v65
    %v70 = vld [vmem:[#allocation3] sm:$0xff]
    %v71 = vld [vmem:[#allocation3 + $0x8] sm:$0xff]
    %v72 = vld [vmem:[#allocation3 + $0x10] sm:$0xff]
    %v73 = vld [vmem:[#allocation3 + $0x18] sm:$0xff]
    %v74 = vadd.f32 %v66, 0.0
    %v75 = vadd.f32 %v67, 0.0
    %v76 = vadd.f32 %v68, 0.0
    %v77 = vadd.f32 %v69, 0.0
    %v78 = vadd.f32 %v70, %v74
    %v79 = vadd.f32 %v71, %v75
    %v80 = vadd.f32 %v72, %v76
    %v81 = vadd.f32 %v73, %v77
    %82 = vst [vmem:[#allocation3] sm:$0xff] %v78
    %83 = vst [vmem:[#allocation3 + $0x8] sm:$0xff] %v79
    %84 = vst [vmem:[#allocation3 + $0x10] sm:$0xff] %v80
    %85 = vst [vmem:[#allocation3 + $0x18] sm:$0xff] %v81
    %v86 = vld [vmem:[#allocation2] sm:$0xff]
    %v87 = vld [vmem:[#allocation2 + $0x8] sm:$0xff]
    %v88 = vld [vmem:[#allocation2 + $0x10] sm:$0xff]
    %v89 = vld [vmem:[#allocation2 + $0x18] sm:$0xff]
    %v90 = vand.u32 2147483647, %v66
    %v91 = vand.u32 2147483647, %v67
    %v92 = vand.u32 2147483647, %v68
    %v93 = vand.u32 2147483647, %v69
    %v94 = vadd.f32 %v90, 0.0
    %v95 = vadd.f32 %v91, 0.0
    %v96 = vadd.f32 %v92, 0.0
    %v97 = vadd.f32 %v93, 0.0
    %v98 = vadd.f32 %v86, %v94
    %v99 = vadd.f32 %v87, %v95
    %v100 = vadd.f32 %v88, %v96
    %v101 = vadd.f32 %v89, %v97
    %102 = vst [vmem:[#allocation2] sm:$0xff] %v98
    %103 = vst [vmem:[#allocation2 + $0x8] sm:$0xff] %v99
    %104 = vst [vmem:[#allocation2 + $0x10] sm:$0xff] %v100
    %105 = vst [vmem:[#allocation2 + $0x18] sm:$0xff] %v101
    // Predicated region
    $region22: #{tpu_custom_call.1} parent=1 // pred_check
      %p106 = pneg %p46
    $region23: #{tpu_custom_call.1} parent=1 // pred_check_branch
      %108 = sbr.rel (%p106) target = $region25
    $region24: #{tpu_custom_call.1} parent=1 // pred_region
      %v109 = vld [vmem:[#allocation2] sm:$0xff]
      %v110 = vld [vmem:[#allocation2 + $0x8] sm:$0xff]
      %v111 = vld [vmem:[#allocation2 + $0x10] sm:$0xff]
      %v112 = vld [vmem:[#allocation2 + $0x18] sm:$0xff]
      %v113 = vadd.f32 %v109, %v110
      %v114 = vadd.f32 %v113, %v111
      %v115 = vadd.f32 %v114, %v112
      %116 = vadd.xlane.f32.xlu0 %v115
      %v117 = vpop.xlane.xlu0 %116
      %v118 = vrot.slane %v117, 4
      %v119 = vadd.f32 %v117, %v118
      %v120 = vrot.slane %v119, 2
      %v121 = vadd.f32 %v119, %v120
      %v122 = vrot.slane %v121, 1
      %v123 = vadd.f32 %v121, %v122
      %s124 = vtos %v123
      %v125 = vld [vmem:[#allocation3] sm:$0xff]
      %v126 = vld [vmem:[#allocation3 + $0x8] sm:$0xff]
      %v127 = vld [vmem:[#allocation3 + $0x10] sm:$0xff]
      %v128 = vld [vmem:[#allocation3 + $0x18] sm:$0xff]
      %v129 = vadd.f32 %v125, %v126
      %v130 = vadd.f32 %v129, %v127
      %v131 = vadd.f32 %v130, %v128
      %132 = vadd.xlane.f32.xlu0 %v131
      %v133 = vpop.xlane.xlu0 %132
      %v134 = vrot.slane %v133, 4
      %v135 = vadd.f32 %v133, %v134
      %v136 = vrot.slane %v135, 2
      %v137 = vadd.f32 %v135, %v136
      %v138 = vrot.slane %v137, 1
      %v139 = vadd.f32 %v137, %v138
      %s140 = vtos %v139
      %s141 = smul.f32 %s124, 0.5
      %s142 = smul.f32 %s140, 0.2
      %s143 = sadd.f32 %s141, %s142
      %s144 = scalar_lea.smem [#allocation9], 0
      %145 = sst [smem:[%s144]] %s143
    $region25: #{tpu_custom_call.1} parent=1 // pred_fallthru
      _
    // Predicated region
    $region26: #{tpu_custom_call.1} parent=1 // pred_check
      _
    $region27: #{tpu_custom_call.1} parent=1 // pred_check_branch
      %147 = sbr.rel (0) target = $region29
    $region28: #{tpu_custom_call.1} parent=1 // pred_region
      %s149 = ssub.s32 16, 16
      %150 = vsyncadd [#allocation6], %s149
      %153 = dma.smem_to_hbm [#allocation9], 16, %s2, [#allocation6]
    $region29: #{tpu_custom_call.1} parent=1 // pred_fallthru
      _
    // Predicated region
    $region30: #{tpu_custom_call.1} parent=1 // pred_check
      _
    $region31: #{tpu_custom_call.1} parent=1 // pred_check_branch
      %155 = sbr.rel (0) target = $region33
    $region32: #{tpu_custom_call.1} parent=1 // pred_region
      %156 = dma.done [#allocation6], 16
    $region33: #{tpu_custom_call.1} parent=1 // pred_fallthru
      _
    %157 = sfence
    %158 = vsyncpa [#allocation5], 1
    %159 = vsyncpa [#allocation8], 1
    %160 = vsyncpa [#allocation6], 1

</llo_original>
